<compile_context>
chip_gen: v6e
topology: v6e:2x2x1
jax: 0.10.0
libtpu: 0.0.40
codegen_flags: <defaults>
</compile_context>

<pallas_src>
import functools

import jax
import jax.numpy as jnp
from jax.experimental import pallas as pl
from jax.experimental.pallas import tpu as pltpu


def _round_up(x, m):
    return ((x + m - 1) // m) * m


def _pick_tile(total, tile_max):
    """Largest multiple-of-128 tile <= tile_max minimizing padding of `total`.

    `total` must already be a multiple of 128.  Prefers zero-waste divisors of
    `total`; among equal waste, prefers the larger tile (fewer grid steps).
    """
    cap = max(128, min((tile_max // 128) * 128, total))
    best_key, best_tile = None, 128
    for cand in range(128, cap + 1, 128):
        waste = (-total) % cand
        key = (waste, -cand)
        if best_key is None or key < best_key:
            best_key, best_tile = key, cand
    return best_tile


def _clip_forward_kernel(img_ref, w_img_ref, b_img_ref,
                         txt_ref, w_txt_ref, b_txt_ref,
                         img_out_ref, txt_out_ref, *, inv_t, tk):
    """Grid point (d, k).

    img_ref   : [Bp, F_pad]     bf16  flattened image, fully VMEM-resident
    w_img_ref : [TK, TD]        bf16  image projection weight tile (streamed)
    b_img_ref : [1, TD]         f32   image projection bias tile
    txt_ref   : [Bp, T, Ep]     bf16  text token features (resident)
    w_txt_ref : [Ep, TD]        bf16  text projection weight tile
    b_txt_ref : [1, TD]         f32   text projection bias tile
    img_out_ref, txt_out_ref : [Bp, TD] f32 (resident across the k axis)
    """
    k = pl.program_id(1)

    # ---- init / text branch: once per D tile (first k step) ----------------
    @pl.when(k == 0)
    def _():
        # Fold the image bias into the accumulator init (output block stays
        # resident across the k reduction axis).
        img_out_ref[...] = jnp.broadcast_to(b_img_ref[...], img_out_ref.shape)

        # Text branch: f32 sum-pool over T, bf16 MXU matmul, f32 bias.
        txt = txt_ref[...].astype(jnp.float32)                  # [Bp, T, Ep]
        pooled = (jnp.sum(txt, axis=1) * inv_t).astype(w_txt_ref.dtype)
        txt_out_ref[...] = (
            jnp.dot(pooled, w_txt_ref[...], preferred_element_type=jnp.float32)
            + b_txt_ref[...])

    # ---- image branch: K-tiled weight-streaming matmul, f32 accumulation ---
    start = pl.multiple_of(k * tk, 128)
    img_blk = img_ref[:, pl.ds(start, tk)]                      # [Bp, TK]
    img_out_ref[...] += jnp.dot(img_blk, w_img_ref[...],
                                preferred_element_type=jnp.float32)


def base_model_forward(image, text, w_img, b_img, w_txt, b_txt,
                       *, tk=4096, d_tiles=1):
    """Equivalent of BaseModel.forward(image, text) -> (image_embed, text_embed).

    tk      : max K tile (flattened-image features) for the weight stream.
    d_tiles : number of D tiles.  1 (default) gives a single contiguous pass
              over w_img (best on single-core v5e/v6e); 2 lets v7x's megacore
              split the weight columns across its two TensorCores.
    """
    B, C, H, W = image.shape
    F = C * H * W
    Bt, T, E = text.shape
    assert B == Bt
    Fw, D = w_img.shape
    assert Fw == F
    assert w_txt.shape == (E, D)

    # ---- layout plumbing (padding + dtype casts), plain JAX -----------------
    B_pad = _round_up(max(B, 8), 8)          # >= 8 sublanes
    D_pad = _round_up(D, 128)                # lane-dense outputs
    E_pad = _round_up(E, 128)

    if d_tiles < 1 or D_pad % (128 * d_tiles) != 0:
        d_tiles = 1
    TD = D_pad // d_tiles

    # Keep the double-buffered weight tile under ~16 MiB so everything fits
    # comfortably in the 48 MiB scoped VMEM budget (v7x: 64 MiB physical/core).
    max_w_tile_bytes = 16 * 1024 * 1024
    tk_cap = max(128, (max_w_tile_bytes // (2 * TD * 2) // 128) * 128)

    F_pad128 = _round_up(F, 128)             # pad F only to 128 lanes
    TK = _pick_tile(F_pad128, min(tk, tk_cap))
    F_pad = _round_up(F_pad128, TK)
    n_k = F_pad // TK

    img_flat = jnp.pad(image.reshape(B, F).astype(jnp.bfloat16),
                       ((0, B_pad - B), (0, F_pad - F)))
    txt = jnp.pad(text.astype(jnp.bfloat16),
                  ((0, B_pad - B), (0, 0), (0, E_pad - E)))
    w_img_p = jnp.pad(w_img.astype(jnp.bfloat16),
                      ((0, F_pad - F), (0, D_pad - D)))
    w_txt_p = jnp.pad(w_txt.astype(jnp.bfloat16),
                      ((0, E_pad - E), (0, D_pad - D)))
    b_img_p = jnp.pad(b_img.astype(jnp.float32), (0, D_pad - D)).reshape(1, D_pad)
    b_txt_p = jnp.pad(b_txt.astype(jnp.float32), (0, D_pad - D)).reshape(1, D_pad)

    kernel = functools.partial(_clip_forward_kernel, inv_t=1.0 / T, tk=TK)

    out_shapes = (
        jax.ShapeDtypeStruct((B_pad, D_pad), jnp.float32),
        jax.ShapeDtypeStruct((B_pad, D_pad), jnp.float32),
    )

    fwd = pl.pallas_call(
        kernel,
        out_shape=out_shapes,
        grid_spec=pltpu.PrefetchScalarGridSpec(
            num_scalar_prefetch=0,
            grid=(d_tiles, n_k),                         # reduction (k) last
            in_specs=[
                # whole flattened image stays VMEM-resident (constant index)
                pl.BlockSpec((B_pad, F_pad), lambda d, k: (0, 0)),
                # streamed, contiguous weight tiles (the only big HBM traffic)
                pl.BlockSpec((TK, TD), lambda d, k: (k, d)),
                pl.BlockSpec((1, TD), lambda d, k: (0, d)),
                # text block is small and resident
                pl.BlockSpec((B_pad, T, E_pad), lambda d, k: (0, 0, 0)),
                pl.BlockSpec((E_pad, TD), lambda d, k: (0, d)),
                pl.BlockSpec((1, TD), lambda d, k: (0, d)),
            ],
            out_specs=[
                pl.BlockSpec((B_pad, TD), lambda d, k: (0, d)),
                pl.BlockSpec((B_pad, TD), lambda d, k: (0, d)),
            ],
        ),
        compiler_params=pltpu.CompilerParams(
            dimension_semantics=("parallel", "arbitrary"),
            vmem_limit_bytes=48 * 1024 * 1024,      # headroom under v7x 64 MiB
        ),
    )
    img_out, txt_out = fwd(img_flat, w_img_p, b_img_p, txt, w_txt_p, b_txt_p)
    return img_out[:B, :D], txt_out[:B, :D]


if __name__ == "__main__":
    # Small shapes consistent with the forward pass
    B, C, H, W = 2, 4, 16, 16          # image: NCHW
    T, E = 8, 32                       # text: [B, T, E] token features
    D = 32                             # embedding dim
    F = C * H * W

    key = jax.random.PRNGKey(0)
    k_img, k_txt, k_wi, k_bi, k_wt, k_bt = jax.random.split(key, 6)

    image = jax.random.normal(k_img, (B, C, H, W), dtype=jnp.float32)
    text = jax.random.normal(k_txt, (B, T, E), dtype=jnp.float32)

    # deterministic parameter init (synthetic, no checkpoint load)
    w_img = jax.random.normal(k_wi, (F, D), dtype=jnp.float32) * 0.02
    b_img = jax.random.normal(k_bi, (D,), dtype=jnp.float32) * 0.01
    w_txt = jax.random.normal(k_wt, (E, D), dtype=jnp.float32) * 0.02
    b_txt = jax.random.normal(k_bt, (D,), dtype=jnp.float32) * 0.01

    image_embed, text_embed = base_model_forward(
        image, text, w_img, b_img, w_txt, b_txt)
    jax.block_until_ready((image_embed, text_embed))

    # reference check (pure JAX, bf16-cast inputs, f32 accumulation — matches
    # the MXU bf16 x bf16 -> f32 semantics used in the kernel)
    img_q = image.reshape(B, F).astype(jnp.bfloat16).astype(jnp.float32)
    wi_q = w_img.astype(jnp.bfloat16).astype(jnp.float32)
    ref_img = img_q @ wi_q + b_img

    txt_q = text.astype(jnp.bfloat16).astype(jnp.float32)
    pooled = txt_q.mean(axis=1).astype(jnp.bfloat16).astype(jnp.float32)
    wt_q = w_txt.astype(jnp.bfloat16).astype(jnp.float32)
    ref_txt = pooled @ wt_q + b_txt

    assert image_embed.shape == (B, D) and text_embed.shape == (B, D)
    assert jnp.allclose(image_embed, ref_img, atol=1e-2, rtol=1e-2)
    assert jnp.allclose(text_embed, ref_txt, atol=1e-2, rtol=1e-2)

    print("KERNEL_OK")
</pallas_src>

<mosaic_0001>
module attributes {stable_mosaic.version = 11 : i64} {
  func.func @_clip_forward_kernel(%arg0: i32, %arg1: i32, %arg2: memref<8x1024xbf16, #tpu.memory_space<vmem>>, %arg3: memref<1024x128xbf16, #tpu.memory_space<vmem>>, %arg4: memref<1x128xf32, #tpu.memory_space<vmem>>, %arg5: memref<8x8x128xbf16, #tpu.memory_space<vmem>>, %arg6: memref<128x128xbf16, #tpu.memory_space<vmem>>, %arg7: memref<1x128xf32, #tpu.memory_space<vmem>>, %arg8: memref<8x128xf32, #tpu.memory_space<vmem>>, %arg9: memref<8x128xf32, #tpu.memory_space<vmem>>) attributes {dimension_semantics = [#tpu.dimension_semantics<parallel>, #tpu.dimension_semantics<arbitrary>], iteration_bounds = array<i64: 1, 1>, scalar_prefetch = 0 : i64, scratch_operands = 0 : i64, tpu.core_type = #tpu.core_type<tc>, window_params = [{pipeline_mode = #tpu.pipeline_mode<synchronous>, transform_indices = @transform_0, window_bounds = array<i64: 8, 1024>}, {transform_indices = @transform_1, window_bounds = array<i64: 1024, 128>}, {transform_indices = @transform_2, window_bounds = array<i64: 1, 128>}, {pipeline_mode = #tpu.pipeline_mode<synchronous>, transform_indices = @transform_3, window_bounds = array<i64: 8, 8, 128>}, {transform_indices = @transform_4, window_bounds = array<i64: 128, 128>}, {transform_indices = @transform_5, window_bounds = array<i64: 1, 128>}, {transform_indices = @transform_6, window_bounds = array<i64: 8, 128>}, {transform_indices = @transform_7, window_bounds = array<i64: 8, 128>}]} {
    %c0_i32 = arith.constant 0 : i32
    %0 = arith.cmpi eq, %arg1, %c0_i32 : i32
    %1 = arith.extui %0 : i1 to i32
    %c0_i32_0 = arith.constant 0 : i32
    %2 = arith.cmpi ne, %1, %c0_i32_0 : i32
    scf.if %2 {
      %c0_7 = arith.constant 0 : index
      %c0_8 = arith.constant 0 : index
      %12 = vector.load %arg4[%c0_7, %c0_8] : memref<1x128xf32, #tpu.memory_space<vmem>>, vector<1x128xf32>
      %13 = vector.shape_cast %12 : vector<1x128xf32> to vector<1x128xf32>
      %14 = vector.broadcast %13 : vector<1x128xf32> to vector<8x128xf32>
      %c0_9 = arith.constant 0 : index
      %c0_10 = arith.constant 0 : index
      %15 = vector.load %arg8[%c0_9, %c0_10] : memref<8x128xf32, #tpu.memory_space<vmem>>, vector<8x128xf32>
      tpu.vector_store %arg8[%c0_9, %c0_10], %14 {strides = array<i32>} : memref<8x128xf32, #tpu.memory_space<vmem>>, vector<8x128xf32>,
      %c0_11 = arith.constant 0 : index
      %c0_12 = arith.constant 0 : index
      %c0_13 = arith.constant 0 : index
      %16 = vector.load %arg5[%c0_11, %c0_12, %c0_13] : memref<8x8x128xbf16, #tpu.memory_space<vmem>>, vector<8x8x128xbf16>
      %17 = arith.extf %16 : vector<8x8x128xbf16> to vector<8x8x128xf32>
      %cst_14 = arith.constant dense<0.000000e+00> : vector<8x128xf32>
      %18 = vector.multi_reduction <add>, %17, %cst_14 [1] : vector<8x8x128xf32> to vector<8x128xf32>
      %cst_15 = arith.constant 1.250000e-01 : f32
      %19 = vector.broadcast %cst_15 : f32 to vector<8x128xf32>
      %20 = arith.mulf %18, %19 : vector<8x128xf32>
      %21 = arith.truncf %20 : vector<8x128xf32> to vector<8x128xbf16>
      %c0_16 = arith.constant 0 : index
      %c0_17 = arith.constant 0 : index
      %22 = vector.load %arg6[%c0_16, %c0_17] : memref<128x128xbf16, #tpu.memory_space<vmem>>, vector<128x128xbf16>
      %cst_18 = arith.constant dense<0.000000e+00> : vector<8x128xf32>
      %23 = tpu.matmul %21, %22, %cst_18 {dimension_numbers = #tpu.dot_dimension_numbers<[1], [0], [0], [1], [0, 0, 1, 1], [], []>} : vector<8x128xbf16>, vector<128x128xbf16>, vector<8x128xf32> -> vector<8x128xf32>
      %c0_19 = arith.constant 0 : index
      %c0_20 = arith.constant 0 : index
      %24 = vector.load %arg7[%c0_19, %c0_20] : memref<1x128xf32, #tpu.memory_space<vmem>>, vector<1x128xf32>
      %25 = vector.broadcast %24 : vector<1x128xf32> to vector<8x128xf32>
      %26 = arith.addf %23, %25 : vector<8x128xf32>
      %c0_21 = arith.constant 0 : index
      %c0_22 = arith.constant 0 : index
      %27 = vector.load %arg9[%c0_21, %c0_22] : memref<8x128xf32, #tpu.memory_space<vmem>>, vector<8x128xf32>
      tpu.vector_store %arg9[%c0_21, %c0_22], %26 {strides = array<i32>} : memref<8x128xf32, #tpu.memory_space<vmem>>, vector<8x128xf32>,
    } else {
    }
    %c1024_i32 = arith.constant 1024 : i32
    %3 = arith.muli %arg1, %c1024_i32 : i32
    %4 = tpu.assume_multiple %3, 128 : i32
    %c0 = arith.constant 0 : index
    %5 = arith.index_cast %4 : i32 to index
    %6 = vector.load %arg2[%c0, %5] : memref<8x1024xbf16, #tpu.memory_space<vmem>>, vector<8x1024xbf16>
    %c0_1 = arith.constant 0 : index
    %c0_2 = arith.constant 0 : index
    %7 = vector.load %arg8[%c0_1, %c0_2] : memref<8x128xf32, #tpu.memory_space<vmem>>, vector<8x128xf32>
    %c0_3 = arith.constant 0 : index
    %c0_4 = arith.constant 0 : index
    %8 = vector.load %arg3[%c0_3, %c0_4] : memref<1024x128xbf16, #tpu.memory_space<vmem>>, vector<1024x128xbf16>
    %cst = arith.constant dense<0.000000e+00> : vector<8x128xf32>
    %9 = tpu.matmul %6, %8, %cst {dimension_numbers = #tpu.dot_dimension_numbers<[1], [0], [0], [1], [0, 0, 1, 1], [], []>} : vector<8x1024xbf16>, vector<1024x128xbf16>, vector<8x128xf32> -> vector<8x128xf32>
    %10 = arith.addf %7, %9 : vector<8x128xf32>
    %c0_5 = arith.constant 0 : index
    %c0_6 = arith.constant 0 : index
    %11 = vector.load %arg8[%c0_5, %c0_6] : memref<8x128xf32, #tpu.memory_space<vmem>>, vector<8x128xf32>
    tpu.vector_store %arg8[%c0_5, %c0_6], %10 {strides = array<i32>} : memref<8x128xf32, #tpu.memory_space<vmem>>, vector<8x128xf32>,
    return
  }
  func.func @transform_0(%arg0: i32, %arg1: i32) -> (i32, i32) {
    %c0_i32 = arith.constant 0 : i32
    %c0_i32_0 = arith.constant 0 : i32
    %c0_i32_1 = arith.constant 0 : i32
    return %c0_i32, %c0_i32_0 : i32, i32
  }
  func.func @transform_1(%arg0: i32, %arg1: i32) -> (i32, i32) {
    %c0_i32 = arith.constant 0 : i32
    return %arg1, %arg0 : i32, i32
  }
  func.func @transform_2(%arg0: i32, %arg1: i32) -> (i32, i32) {
    %c0_i32 = arith.constant 0 : i32
    %c0_i32_0 = arith.constant 0 : i32
    return %c0_i32, %arg0 : i32, i32
  }
  func.func @transform_3(%arg0: i32, %arg1: i32) -> (i32, i32, i32) {
    %c0_i32 = arith.constant 0 : i32
    %c0_i32_0 = arith.constant 0 : i32
    %c0_i32_1 = arith.constant 0 : i32
    %c0_i32_2 = arith.constant 0 : i32
    return %c0_i32, %c0_i32_0, %c0_i32_1 : i32, i32, i32
  }
  func.func @transform_4(%arg0: i32, %arg1: i32) -> (i32, i32) {
    %c0_i32 = arith.constant 0 : i32
    %c0_i32_0 = arith.constant 0 : i32
    return %c0_i32, %arg0 : i32, i32
  }
  func.func @transform_5(%arg0: i32, %arg1: i32) -> (i32, i32) {
    %c0_i32 = arith.constant 0 : i32
    %c0_i32_0 = arith.constant 0 : i32
    return %c0_i32, %arg0 : i32, i32
  }
  func.func @transform_6(%arg0: i32, %arg1: i32) -> (i32, i32) {
    %c0_i32 = arith.constant 0 : i32
    %c0_i32_0 = arith.constant 0 : i32
    return %c0_i32, %arg0 : i32, i32
  }
  func.func @transform_7(%arg0: i32, %arg1: i32) -> (i32, i32) {
    %c0_i32 = arith.constant 0 : i32
    %c0_i32_0 = arith.constant 0 : i32
    return %c0_i32, %arg0 : i32, i32
  }
}

</mosaic_0001>

<llo_original>
// kernel: tpu_custom_call.1
$region0: #{tpu_custom_call.1}
  #allocation0 [shape = 'u32[]', space=smem, size = 0x4, offset = 0x4, fixed_abs, tag = 'smem constant byte address 0x4 - core index']
  #allocation1 [shape = 'u32[144,128]{1,0:T(1,128)}', space=vmem, size = 0x12000, scoped, tag = 'internal scratch']
  %s0 = inlined_call_operand.hbm [shape: bf16[8,1024], index: 0, kind: input, shape index: {}]
  %s1 = inlined_call_operand.hbm [shape: bf16[1024,128], index: 1, kind: input, shape index: {}]
  %s2 = inlined_call_operand.vmem [shape: f32[1,128], index: 2, kind: input, shape index: {}]
  %s3 = inlined_call_operand.hbm [shape: bf16[8,8,128], index: 3, kind: input, shape index: {}]
  %s4 = inlined_call_operand.hbm [shape: bf16[128,128], index: 4, kind: input, shape index: {}]
  %s5 = inlined_call_operand.vmem [shape: f32[1,128], index: 5, kind: input, shape index: {}]
  %s6 = inlined_call_operand.hbm [shape: f32[8,128], index: 6, kind: output, shape index: {0}]
  %s7 = inlined_call_operand.hbm [shape: f32[8,128], index: 7, kind: output, shape index: {1}]
  %8 = xla_tuple %s6, %s7
  %s9 = sld [smem:[#allocation0]]
  $region62: #{tpu_custom_call.1} parent=0
    _
  %s11 = ssub.s32 1, %s9
  %s12 = scalar_select 0, %s11, %s9
  $region1: #{tpu_custom_call.1} parent=0
    #allocation2 [shape = 'u8[16384]{0}', space=vmem, size = 0x4000, scoped, tag = 'input window, operand 0, single buffered']
    #allocation3 [shape = 's32[1]{0}', space=sflag, size = 0x4, scoped, tag = 'scoped memory for tpu_custom_call.1']
    #allocation4 [shape = 's32[1]{0}', space=sflag, size = 0x4, scoped, tag = 'scoped memory for tpu_custom_call.1']
    #allocation5 [shape = 'u8[262144]{0}', space=vmem, size = 0x40000, scoped, tag = 'input window, operand 1, single buffered']
    #allocation6 [shape = 's32[1]{0}', space=sflag, size = 0x4, scoped, tag = 'scoped memory for tpu_custom_call.1']
    #allocation7 [shape = 'u8[16384]{0}', space=vmem, size = 0x4000, scoped, tag = 'input window, operand 3, single buffered']
    #allocation8 [shape = 'u8[32768]{0}', space=vmem, size = 0x8000, scoped, tag = 'input window, operand 4, single buffered']
    #allocation9 [shape = 's32[1]{0}', space=sflag, size = 0x4, scoped, tag = 'scoped memory for tpu_custom_call.1']
    #allocation10 [shape = 'u8[4096]{0}', space=vmem, size = 0x1000, scoped, tag = 'output window, operand 0, single buffered']
    #allocation11 [shape = 'u8[4096]{0}', space=vmem, size = 0x1000, scoped, tag = 'output window, operand 1, single buffered']
    #allocation12 [shape = 's32[1]{0}', space=sflag, size = 0x4, scoped, tag = 'scoped memory for tpu_custom_call.1']
    %13 = vsyncpa [#allocation3], 0
    %14 = vsyncpa [#allocation6], 0
    %15 = vsyncpa [#allocation9], 0
    %16 = vsyncpa [#allocation4], 0
    %17 = vsyncpa [#allocation12], 0
    // Predicated region
    $region2: #{tpu_custom_call.1} parent=1 // pred_check
      _
    $region3: #{tpu_custom_call.1} parent=1 // pred_check_branch
      %19 = sbr.rel (0) target = $region5
    $region4: #{tpu_custom_call.1} parent=1 // pred_region
      %s21 = ssub.s32 512, 512
      %22 = vsyncadd [#allocation3], %s21
      %s24 = sshll.u32 [#allocation2], 4
      %s25 = int_to_ptr.vmem [resolvable:$true] %s24
      %27 = dma.hbm_to_vmem [thread:$0]  %s0, 512, %s25, [#allocation3]
    $region5: #{tpu_custom_call.1} parent=1 // pred_fallthru
      _
    // Predicated region
    $region6: #{tpu_custom_call.1} parent=1 // pred_check
      _
    $region7: #{tpu_custom_call.1} parent=1 // pred_check_branch
      %29 = sbr.rel (0) target = $region9
    $region8: #{tpu_custom_call.1} parent=1 // pred_region
      %s31 = ssub.s32 8192, 8192
      %32 = vsyncadd [#allocation6], %s31
      %s33 = sshll.u32 [#allocation5], 4
      %s34 = int_to_ptr.vmem [resolvable:$true] %s33
      %39 = dma.hbm_to_vmem [thread:$0]  %s1, 8192, %s34, [#allocation6], 64, 64, 4
    $region9: #{tpu_custom_call.1} parent=1 // pred_fallthru
      _
    // Predicated region
    $region10: #{tpu_custom_call.1} parent=1 // pred_check
      _
    $region11: #{tpu_custom_call.1} parent=1 // pred_check_branch
      %41 = sbr.rel (0) target = $region13
    $region12: #{tpu_custom_call.1} parent=1 // pred_region
      _
    $region13: #{tpu_custom_call.1} parent=1 // pred_fallthru
      _
    // Predicated region
    $region14: #{tpu_custom_call.1} parent=1 // pred_check
      _
    $region15: #{tpu_custom_call.1} parent=1 // pred_check_branch
      %43 = sbr.rel (0) target = $region17
    $region16: #{tpu_custom_call.1} parent=1 // pred_region
      %s45 = ssub.s32 512, 512
      %46 = vsyncadd [#allocation6], %s45
      %s47 = sshll.u32 [#allocation7], 4
      %s48 = int_to_ptr.vmem [resolvable:$true] %s47
      %53 = dma.hbm_to_vmem [thread:$0]  %s3, 512, %s48, [#allocation6], 64, 64, 4
    $region17: #{tpu_custom_call.1} parent=1 // pred_fallthru
      _
    // Predicated region
    $region18: #{tpu_custom_call.1} parent=1 // pred_check
      _
    $region19: #{tpu_custom_call.1} parent=1 // pred_check_branch
      %55 = sbr.rel (0) target = $region21
    $region20: #{tpu_custom_call.1} parent=1 // pred_region
      %s57 = ssub.s32 1024, 1024
      %58 = vsyncadd [#allocation9], %s57
      %s59 = sshll.u32 [#allocation8], 4
      %s60 = int_to_ptr.vmem [resolvable:$true] %s59
      %65 = dma.hbm_to_vmem [thread:$0]  %s4, 1024, %s60, [#allocation9], 64, 64, 4
    $region21: #{tpu_custom_call.1} parent=1 // pred_fallthru
      _
    // Predicated region
    $region22: #{tpu_custom_call.1} parent=1 // pred_check
      _
    $region23: #{tpu_custom_call.1} parent=1 // pred_check_branch
      %67 = sbr.rel (0) target = $region25
    $region24: #{tpu_custom_call.1} parent=1 // pred_region
      _
    $region25: #{tpu_custom_call.1} parent=1 // pred_fallthru
      _
    // Predicated region
    $region26: #{tpu_custom_call.1} parent=1 // pred_check
      _
    $region27: #{tpu_custom_call.1} parent=1 // pred_check_branch
      %69 = sbr.rel (0) target = $region29
    $region28: #{tpu_custom_call.1} parent=1 // pred_region
      %70 = dma.done [#allocation3], 512
    $region29: #{tpu_custom_call.1} parent=1 // pred_fallthru
      _
    // Predicated region
    $region30: #{tpu_custom_call.1} parent=1 // pred_check
      _
    $region31: #{tpu_custom_call.1} parent=1 // pred_check_branch
      %72 = sbr.rel (0) target = $region33
    $region32: #{tpu_custom_call.1} parent=1 // pred_region
      %73 = dma.done [#allocation6], 8192
    $region33: #{tpu_custom_call.1} parent=1 // pred_fallthru
      _
    // Predicated region
    $region34: #{tpu_custom_call.1} parent=1 // pred_check
      _
    $region35: #{tpu_custom_call.1} parent=1 // pred_check_branch
      %75 = sbr.rel (0) target = $region37
    $region36: #{tpu_custom_call.1} parent=1 // pred_region
      %76 = dma.done [#allocation6], 512
    $region37: #{tpu_custom_call.1} parent=1 // pred_fallthru
      _
    // Predicated region
    $region38: #{tpu_custom_call.1} parent=1 // pred_check
      _
    $region39: #{tpu_custom_call.1} parent=1 // pred_check_branch
      %78 = sbr.rel (0) target = $region41
    $region40: #{tpu_custom_call.1} parent=1 // pred_region
      %79 = dma.done [#allocation9], 1024
    $region41: #{tpu_custom_call.1} parent=1 // pred_fallthru
      _
    %p81 = scmp.eq.s32.totalorder 0, 0
    // Predicated region
    $region42: #{tpu_custom_call.1} parent=1 // pred_check
      %p82 = pneg %p81
    $region43: #{tpu_custom_call.1} parent=1 // pred_check_branch
      %84 = sbr.rel (%p82) target = $region45
    $region44: #{tpu_custom_call.1} parent=1 // pred_region
      %v85 = vld [vmem:[%s2] sm:$0x1]
      %v87 = vlaneseq
      %v88 = vshrl.u32 %v87, 7
      %v89 = vsub.s32 0, %v88
      %v90 = vrot.slane %v85, %v89
      %92 = vst [vmem:[#allocation10] sm:$0xff] %v90
      %v93 = vld [vmem:[#allocation7] sm:$0xf]
      %v94 = vld [vmem:[#allocation7 + $0x4] sm:$0xf]
      %v95 = vld [vmem:[#allocation7 + $0x8] sm:$0xf]
      %v96 = vld [vmem:[#allocation7 + $0xc] sm:$0xf]
      %v97 = vld [vmem:[#allocation7 + $0x10] sm:$0xf]
      %v98 = vld [vmem:[#allocation7 + $0x14] sm:$0xf]
      %v99 = vld [vmem:[#allocation7 + $0x18] sm:$0xf]
      %v100 = vld [vmem:[#allocation7 + $0x1c] sm:$0xf]
      %v101 = vunpack.c.l.bf16 %v93
      %v102 = vunpack.c.l.bf16 %v94
      %v103 = vunpack.c.l.bf16 %v95
      %v104 = vunpack.c.l.bf16 %v96
      %v105 = vunpack.c.l.bf16 %v97
      %v106 = vunpack.c.l.bf16 %v98
      %v107 = vunpack.c.l.bf16 %v99
      %v108 = vunpack.c.l.bf16 %v100
      %v109 = vrot.slane %v101, 4
      %v110 = vadd.f32 %v101, %v109
      %v111 = vrot.slane %v110, 2
      %v112 = vadd.f32 %v110, %v111
      %v113 = vrot.slane %v112, 1
      %v114 = vadd.f32 %v112, %v113
      %v115 = vrot.slane %v102, 4
      %v116 = vadd.f32 %v102, %v115
      %v117 = vrot.slane %v116, 2
      %v118 = vadd.f32 %v116, %v117
      %v119 = vrot.slane %v118, 1
      %v120 = vadd.f32 %v118, %v119
      %v121 = vrot.slane %v103, 4
      %v122 = vadd.f32 %v103, %v121
      %v123 = vrot.slane %v122, 2
      %v124 = vadd.f32 %v122, %v123
      %v125 = vrot.slane %v124, 1
      %v126 = vadd.f32 %v124, %v125
      %v127 = vrot.slane %v104, 4
      %v128 = vadd.f32 %v104, %v127
      %v129 = vrot.slane %v128, 2
      %v130 = vadd.f32 %v128, %v129
      %v131 = vrot.slane %v130, 1
      %v132 = vadd.f32 %v130, %v131
      %v133 = vrot.slane %v105, 4
      %v134 = vadd.f32 %v105, %v133
      %v135 = vrot.slane %v134, 2
      %v136 = vadd.f32 %v134, %v135
      %v137 = vrot.slane %v136, 1
      %v138 = vadd.f32 %v136, %v137
      %v139 = vrot.slane %v106, 4
      %v140 = vadd.f32 %v106, %v139
      %v141 = vrot.slane %v140, 2
      %v142 = vadd.f32 %v140, %v141
      %v143 = vrot.slane %v142, 1
      %v144 = vadd.f32 %v142, %v143
      %v145 = vrot.slane %v107, 4
      %v146 = vadd.f32 %v107, %v145
      %v147 = vrot.slane %v146, 2
      %v148 = vadd.f32 %v146, %v147
      %v149 = vrot.slane %v148, 1
      %v150 = vadd.f32 %v148, %v149
      %v151 = vrot.slane %v108, 4
      %v152 = vadd.f32 %v108, %v151
      %v153 = vrot.slane %v152, 2
      %v154 = vadd.f32 %v152, %v153
      %v155 = vrot.slane %v154, 1
      %v156 = vadd.f32 %v154, %v155
      %v157 = vmul.f32 %v114, 0.125
      %v158 = vmul.f32 %v120, 0.125
      %v159 = vmul.f32 %v126, 0.125
      %v160 = vmul.f32 %v132, 0.125
      %v161 = vmul.f32 %v138, 0.125
      %v162 = vmul.f32 %v144, 0.125
      %v163 = vmul.f32 %v150, 0.125
      %v164 = vmul.f32 %v156, 0.125
      %v165 = vpack.c.bf16 %v157, %v157
      %v166 = vpack.c.bf16 %v158, %v158
      %v167 = vpack.c.bf16 %v159, %v159
      %v168 = vpack.c.bf16 %v160, %v160
      %v169 = vpack.c.bf16 %v161, %v161
      %v170 = vpack.c.bf16 %v162, %v162
      %v171 = vpack.c.bf16 %v163, %v163
      %v172 = vpack.c.bf16 %v164, %v164
      %v173 = vld [vmem:[#allocation8] sm:$0xf]
      %v174 = vld [vmem:[#allocation8 + $0x4] sm:$0xf]
      %v175 = vld [vmem:[#allocation8 + $0x8] sm:$0xf]
      %v176 = vld [vmem:[#allocation8 + $0xc] sm:$0xf]
      %v177 = vld [vmem:[#allocation8 + $0x10] sm:$0xf]
      %v178 = vld [vmem:[#allocation8 + $0x14] sm:$0xf]
      %v179 = vld [vmem:[#allocation8 + $0x18] sm:$0xf]
      %v180 = vld [vmem:[#allocation8 + $0x1c] sm:$0xf]
      %v181 = vld [vmem:[#allocation8 + $0x20] sm:$0xf]
      %v182 = vld [vmem:[#allocation8 + $0x24] sm:$0xf]
      %v183 = vld [vmem:[#allocation8 + $0x28] sm:$0xf]
      %v184 = vld [vmem:[#allocation8 + $0x2c] sm:$0xf]
      %v185 = vld [vmem:[#allocation8 + $0x30] sm:$0xf]
      %v186 = vld [vmem:[#allocation8 + $0x34] sm:$0xf]
      %v187 = vld [vmem:[#allocation8 + $0x38] sm:$0xf]
      %v188 = vld [vmem:[#allocation8 + $0x3c] sm:$0xf]
      %v189 = vld [vmem:[%s5] sm:$0x1]
      %v191 = vlaneseq
      %v192 = vshrl.u32 %v191, 7
      %v193 = vsub.s32 0, %v192
      %v194 = vrot.slane %v189, %v193
      %v204 = vunpack.c.l.b16 %v165
      %v205 = vunpack.c.l.b16 %v166
      %v206 = vunpack.c.l.b16 %v167
      %v207 = vunpack.c.l.b16 %v168
      %v208 = vunpack.c.l.b16 %v169
      %v209 = vunpack.c.l.b16 %v170
      %v210 = vunpack.c.l.b16 %v171
      %v211 = vunpack.c.l.b16 %v172
      %vm212 = vcmask 1041409
      %v213 = vsel %vm212, %v205, %v204
      %vm214 = vcmask 1042434
      %v215 = vsel %vm214, %v206, %v213
      %vm216 = vcmask 1043459
      %v217 = vsel %vm216, %v207, %v215
      %vm218 = vcmask 1044484
      %v219 = vsel %vm218, %v208, %v217
      %vm220 = vcmask 1045509
      %v221 = vsel %vm220, %v209, %v219
      %vm222 = vcmask 1046534
      %v223 = vsel %vm222, %v210, %v221
      %vm224 = vcmask 1047559
      %v225 = vsel %vm224, %v211, %v223
      %v226 = vpack.c.b16 %v225, %v225
      %v244 = vunpack.c.l.b16 %v173
      %v245 = vunpack.c.l.b16 %v174
      %v246 = vunpack.c.l.b16 %v175
      %v247 = vunpack.c.l.b16 %v176
      %v248 = vunpack.c.l.b16 %v177
      %v249 = vunpack.c.l.b16 %v178
      %v250 = vunpack.c.l.b16 %v179
      %v251 = vunpack.c.l.b16 %v180
      %v252 = vunpack.c.l.b16 %v181
      %v253 = vunpack.c.l.b16 %v182
      %v254 = vunpack.c.l.b16 %v183
      %v255 = vunpack.c.l.b16 %v184
      %v256 = vunpack.c.l.b16 %v185
      %v257 = vunpack.c.l.b16 %v186
      %v258 = vunpack.c.l.b16 %v187
      %v259 = vunpack.c.l.b16 %v188
      %v260 = vpack.c.b16 %v245, %v244
      %v261 = vpack.c.b16 %v247, %v246
      %v262 = vpack.c.b16 %v249, %v248
      %v263 = vpack.c.b16 %v251, %v250
      %v264 = vpack.c.b16 %v253, %v252
      %v265 = vpack.c.b16 %v255, %v254
      %v266 = vpack.c.b16 %v257, %v256
      %v267 = vpack.c.b16 %v259, %v258
      %276 = vmatprep.subr.bf16.mxu0 0
      %277 = vmatpush1.bf16.msra.mxu0 %v267
      %278 = vmatprep.subr.bf16.mxu0 0
      %279 = vmatpush1.bf16.msra.mxu0 %v266
      %280 = vmatprep.subr.bf16.mxu0 0
      %281 = vmatpush1.bf16.msra.mxu0 %v265
      %282 = vmatprep.subr.bf16.mxu0 0
      %283 = vmatpush1.bf16.msra.mxu0 %v264
      %284 = vmatprep.subr.bf16.mxu0 0
      %285 = vmatpush1.bf16.msra.mxu0 %v263
      %286 = vmatprep.subr.bf16.mxu0 0
      %287 = vmatpush1.bf16.msra.mxu0 %v262
      %288 = vmatprep.subr.bf16.mxu0 0
      %289 = vmatpush1.bf16.msra.mxu0 %v261
      %290 = vmatprep.subr.bf16.mxu0 0
      %291 = vmatpush1.bf16.msra.mxu0 %v260
      %292 = vmatprep.subr.bf16.mxu0 0
      %293 = vmatpush2.bf16.msra.mxu0 0
      %294 = vmatprep.subr.bf16.mxu0 0
      %295 = vmatpush2.bf16.msra.mxu0 0
      %296 = vmatprep.subr.bf16.mxu0 0
      %297 = vmatpush2.bf16.msra.mxu0 0
      %298 = vmatprep.subr.bf16.mxu0 0
      %299 = vmatpush2.bf16.msra.mxu0 0
      %300 = vmatprep.subr.bf16.mxu0 0
      %301 = vmatpush2.bf16.msra.mxu0 0
      %302 = vmatprep.subr.bf16.mxu0 0
      %303 = vmatpush2.bf16.msra.mxu0 0
      %304 = vmatprep.subr.bf16.mxu0 0
      %305 = vmatpush2.bf16.msra.mxu0 0
      %306 = vmatprep.subr.bf16.mxu0 0
      %307 = vmatpush2.bf16.msra.mxu0 0
      %308 = vmatprep.mubr.bf16.mxu0 0
      %309 = vmatmul.mubr.bf16.gmra.mxu0 %v226
      %v310 = vpop.f32.mrf.mxu0
      %v311 = vadd.f32 %v194, %v310
      %v312 = vpop.f32.mrf.mxu0
      %v313 = vpop.f32.mrf.mxu0
      %v314 = vpop.f32.mrf.mxu0
      %315 = vdwg.mxu0
      %316 = vst [vmem:[#allocation11] sm:$0xff] %v311
    $region45: #{tpu_custom_call.1} parent=1 // pred_fallthru
      _
    %s317 = smul.u32 0, 1024
    %s318 = sshra.s32 %s317, 7
    %s319 = sand.u32 %s317, 127
    %s320 = smul.addr %s318, 4
    %s321 = scalar_lea.vmem [#allocation2], %s320
    %v322 = vld [vmem:[%s321] sm:$0xff]
    %v323 = vld [vmem:[%s321 + $0x8] sm:$0xff]
    %v324 = vld [vmem:[%s321 + $0x10] sm:$0xff]
    %v325 = vld [vmem:[%s321 + $0x18] sm:$0xff]
    %v326 = vld [vmem:[#allocation10] sm:$0xff]
    %v327 = vld [vmem:[#allocation5] sm:$0xf]
    %v328 = vld [vmem:[#allocation5 + $0x4] sm:$0xf]
    %v329 = vld [vmem:[#allocation5 + $0x8] sm:$0xf]
    %v330 = vld [vmem:[#allocation5 + $0xc] sm:$0xf]
    %v331 = vld [vmem:[#allocation5 + $0x10] sm:$0xf]
    %v332 = vld [vmem:[#allocation5 + $0x14] sm:$0xf]
    %v333 = vld [vmem:[#allocation5 + $0x18] sm:$0xf]
    %v334 = vld [vmem:[#allocation5 + $0x1c] sm:$0xf]
    %v335 = vld [vmem:[#allocation5 + $0x20] sm:$0xf]
    %v336 = vld [vmem:[#allocation5 + $0x24] sm:$0xf]
    %v337 = vld [vmem:[#allocation5 + $0x28] sm:$0xf]
    %v338 = vld [vmem:[#allocation5 + $0x2c] sm:$0xf]
    %v339 = vld [vmem:[#allocation5 + $0x30] sm:$0xf]
    %v340 = vld [vmem:[#allocation5 + $0x34] sm:$0xf]
    %v341 = vld [vmem:[#allocation5 + $0x38] sm:$0xf]
    %v342 = vld [vmem:[#allocation5 + $0x3c] sm:$0xf]
    %v343 = vld [vmem:[#allocation5 + $0x40] sm:$0xf]
    %v344 = vld [vmem:[#allocation5 + $0x44] sm:$0xf]
    %v345 = vld [vmem:[#allocation5 + $0x48] sm:$0xf]
    %v346 = vld [vmem:[#allocation5 + $0x4c] sm:$0xf]
    %v347 = vld [vmem:[#allocation5 + $0x50] sm:$0xf]
    %v348 = vld [vmem:[#allocation5 + $0x54] sm:$0xf]
    %v349 = vld [vmem:[#allocation5 + $0x58] sm:$0xf]
    %v350 = vld [vmem:[#allocation5 + $0x5c] sm:$0xf]
    %v351 = vld [vmem:[#allocation5 + $0x60] sm:$0xf]
    %v352 = vld [vmem:[#allocation5 + $0x64] sm:$0xf]
    %v353 = vld [vmem:[#allocation5 + $0x68] sm:$0xf]
    %v354 = vld [vmem:[#allocation5 + $0x6c] sm:$0xf]
    %v355 = vld [vmem:[#allocation5 + $0x70] sm:$0xf]
    %v356 = vld [vmem:[#allocation5 + $0x74] sm:$0xf]
    %v357 = vld [vmem:[#allocation5 + $0x78] sm:$0xf]
    %v358 = vld [vmem:[#allocation5 + $0x7c] sm:$0xf]
    %v359 = vld [vmem:[#allocation5 + $0x80] sm:$0xf]
    %v360 = vld [vmem:[#allocation5 + $0x84] sm:$0xf]
    %v361 = vld [vmem:[#allocation5 + $0x88] sm:$0xf]
    %v362 = vld [vmem:[#allocation5 + $0x8c] sm:$0xf]
    %v363 = vld [vmem:[#allocation5 + $0x90] sm:$0xf]
    %v364 = vld [vmem:[#allocation5 + $0x94] sm:$0xf]
    %v365 = vld [vmem:[#allocation5 + $0x98] sm:$0xf]
    %v366 = vld [vmem:[#allocation5 + $0x9c] sm:$0xf]
    %v367 = vld [vmem:[#allocation5 + $0xa0] sm:$0xf]
    %v368 = vld [vmem:[#allocation5 + $0xa4] sm:$0xf]
    %v369 = vld [vmem:[#allocation5 + $0xa8] sm:$0xf]
    %v370 = vld [vmem:[#allocation5 + $0xac] sm:$0xf]
    %v371 = vld [vmem:[#allocation5 + $0xb0] sm:$0xf]
    %v372 = vld [vmem:[#allocation5 + $0xb4] sm:$0xf]
    %v373 = vld [vmem:[#allocation5 + $0xb8] sm:$0xf]
    %v374 = vld [vmem:[#allocation5 + $0xbc] sm:$0xf]
    %v375 = vld [vmem:[#allocation5 + $0xc0] sm:$0xf]
    %v376 = vld [vmem:[#allocation5 + $0xc4] sm:$0xf]
    %v377 = vld [vmem:[#allocation5 + $0xc8] sm:$0xf]
    %v378 = vld [vmem:[#allocation5 + $0xcc] sm:$0xf]
    %v379 = vld [vmem:[#allocation5 + $0xd0] sm:$0xf]
    %v380 = vld [vmem:[#allocation5 + $0xd4] sm:$0xf]
    %v381 = vld [vmem:[#allocation5 + $0xd8] sm:$0xf]
    %v382 = vld [vmem:[#allocation5 + $0xdc] sm:$0xf]
    %v383 = vld [vmem:[#allocation5 + $0xe0] sm:$0xf]
    %v384 = vld [vmem:[#allocation5 + $0xe4] sm:$0xf]
    %v385 = vld [vmem:[#allocation5 + $0xe8] sm:$0xf]
    %v386 = vld [vmem:[#allocation5 + $0xec] sm:$0xf]
    %v387 = vld [vmem:[#allocation5 + $0xf0] sm:$0xf]
    %v388 = vld [vmem:[#allocation5 + $0xf4] sm:$0xf]
    %v389 = vld [vmem:[#allocation5 + $0xf8] sm:$0xf]
    %v390 = vld [vmem:[#allocation5 + $0xfc] sm:$0xf]
    %v391 = vld [vmem:[#allocation5 + $0x100] sm:$0xf]
    %v392 = vld [vmem:[#allocation5 + $0x104] sm:$0xf]
    %v393 = vld [vmem:[#allocation5 + $0x108] sm:$0xf]
    %v394 = vld [vmem:[#allocation5 + $0x10c] sm:$0xf]
    %v395 = vld [vmem:[#allocation5 + $0x110] sm:$0xf]
    %v396 = vld [vmem:[#allocation5 + $0x114] sm:$0xf]
    %v397 = vld [vmem:[#allocation5 + $0x118] sm:$0xf]
    %v398 = vld [vmem:[#allocation5 + $0x11c] sm:$0xf]
    %v399 = vld [vmem:[#allocation5 + $0x120] sm:$0xf]
    %v400 = vld [vmem:[#allocation5 + $0x124] sm:$0xf]
    %v401 = vld [vmem:[#allocation5 + $0x128] sm:$0xf]
    %v402 = vld [vmem:[#allocation5 + $0x12c] sm:$0xf]
    %v403 = vld [vmem:[#allocation5 + $0x130] sm:$0xf]
    %v404 = vld [vmem:[#allocation5 + $0x134] sm:$0xf]
    %v405 = vld [vmem:[#allocation5 + $0x138] sm:$0xf]
    %v406 = vld [vmem:[#allocation5 + $0x13c] sm:$0xf]
    %v407 = vld [vmem:[#allocation5 + $0x140] sm:$0xf]
    %v408 = vld [vmem:[#allocation5 + $0x144] sm:$0xf]
    %v409 = vld [vmem:[#allocation5 + $0x148] sm:$0xf]
    %v410 = vld [vmem:[#allocation5 + $0x14c] sm:$0xf]
    %v411 = vld [vmem:[#allocation5 + $0x150] sm:$0xf]
    %v412 = vld [vmem:[#allocation5 + $0x154] sm:$0xf]
    %v413 = vld [vmem:[#allocation5 + $0x158] sm:$0xf]
    %v414 = vld [vmem:[#allocation5 + $0x15c] sm:$0xf]
    %v415 = vld [vmem:[#allocation5 + $0x160] sm:$0xf]
    %v416 = vld [vmem:[#allocation5 + $0x164] sm:$0xf]
    %v417 = vld [vmem:[#allocation5 + $0x168] sm:$0xf]
    %v418 = vld [vmem:[#allocation5 + $0x16c] sm:$0xf]
    %v419 = vld [vmem:[#allocation5 + $0x170] sm:$0xf]
    %v420 = vld [vmem:[#allocation5 + $0x174] sm:$0xf]
    %v421 = vld [vmem:[#allocation5 + $0x178] sm:$0xf]
    %v422 = vld [vmem:[#allocation5 + $0x17c] sm:$0xf]
    %v423 = vld [vmem:[#allocation5 + $0x180] sm:$0xf]
    %v424 = vld [vmem:[#allocation5 + $0x184] sm:$0xf]
    %v425 = vld [vmem:[#allocation5 + $0x188] sm:$0xf]
    %v426 = vld [vmem:[#allocation5 + $0x18c] sm:$0xf]
    %v427 = vld [vmem:[#allocation5 + $0x190] sm:$0xf]
    %v428 = vld [vmem:[#allocation5 + $0x194] sm:$0xf]
    %v429 = vld [vmem:[#allocation5 + $0x198] sm:$0xf]
    %v430 = vld [vmem:[#allocation5 + $0x19c] sm:$0xf]
    %v431 = vld [vmem:[#allocation5 + $0x1a0] sm:$0xf]
    %v432 = vld [vmem:[#allocation5 + $0x1a4] sm:$0xf]
    %v433 = vld [vmem:[#allocation5 + $0x1a8] sm:$0xf]
    %v434 = vld [vmem:[#allocation5 + $0x1ac] sm:$0xf]
    %v435 = vld [vmem:[#allocation5 + $0x1b0] sm:$0xf]
    %v436 = vld [vmem:[#allocation5 + $0x1b4] sm:$0xf]
    %v437 = vld [vmem:[#allocation5 + $0x1b8] sm:$0xf]
    %v438 = vld [vmem:[#allocation5 + $0x1bc] sm:$0xf]
    %v439 = vld [vmem:[#allocation5 + $0x1c0] sm:$0xf]
    %v440 = vld [vmem:[#allocation5 + $0x1c4] sm:$0xf]
    %v441 = vld [vmem:[#allocation5 + $0x1c8] sm:$0xf]
    %v442 = vld [vmem:[#allocation5 + $0x1cc] sm:$0xf]
    %v443 = vld [vmem:[#allocation5 + $0x1d0] sm:$0xf]
    %v444 = vld [vmem:[#allocation5 + $0x1d4] sm:$0xf]
    %v445 = vld [vmem:[#allocation5 + $0x1d8] sm:$0xf]
    %v446 = vld [vmem:[#allocation5 + $0x1dc] sm:$0xf]
    %v447 = vld [vmem:[#allocation5 + $0x1e0] sm:$0xf]
    %v448 = vld [vmem:[#allocation5 + $0x1e4] sm:$0xf]
    %v449 = vld [vmem:[#allocation5 + $0x1e8] sm:$0xf]
    %v450 = vld [vmem:[#allocation5 + $0x1ec] sm:$0xf]
    %v451 = vld [vmem:[#allocation5 + $0x1f0] sm:$0xf]
    %v452 = vld [vmem:[#allocation5 + $0x1f4] sm:$0xf]
    %v453 = vld [vmem:[#allocation5 + $0x1f8] sm:$0xf]
    %v454 = vld [vmem:[#allocation5 + $0x1fc] sm:$0xf]
    %v459 = vunpack.c.l.b16 %v322
    %v460 = vunpack.c.h.b16 %v322
    %v461 = vunpack.c.l.b16 %v323
    %v462 = vunpack.c.h.b16 %v323
    %v463 = vunpack.c.l.b16 %v324
    %v464 = vunpack.c.h.b16 %v324
    %v465 = vunpack.c.l.b16 %v325
    %v466 = vunpack.c.h.b16 %v325
    %v467 = vpack.c.b16 %v459, %v459
    %v468 = vpack.c.b16 %v460, %v460
    %v469 = vpack.c.b16 %v461, %v461
    %v470 = vpack.c.b16 %v462, %v462
    %v471 = vpack.c.b16 %v463, %v463
    %v472 = vpack.c.b16 %v464, %v464
    %v473 = vpack.c.b16 %v465, %v465
    %v474 = vpack.c.b16 %v466, %v466
    %v611 = vunpack.c.l.b16 %v327
    %v612 = vunpack.c.l.b16 %v328
    %v613 = vunpack.c.l.b16 %v329
    %v614 = vunpack.c.l.b16 %v330
    %v615 = vunpack.c.l.b16 %v331
    %v616 = vunpack.c.l.b16 %v332
    %v617 = vunpack.c.l.b16 %v333
    %v618 = vunpack.c.l.b16 %v334
    %v619 = vunpack.c.l.b16 %v335
    %v620 = vunpack.c.l.b16 %v336
    %v621 = vunpack.c.l.b16 %v337
    %v622 = vunpack.c.l.b16 %v338
    %v623 = vunpack.c.l.b16 %v339
    %v624 = vunpack.c.l.b16 %v340
    %v625 = vunpack.c.l.b16 %v341
    %v626 = vunpack.c.l.b16 %v342
    %v627 = vunpack.c.l.b16 %v343
    %v628 = vunpack.c.l.b16 %v344
    %v629 = vunpack.c.l.b16 %v345
    %v630 = vunpack.c.l.b16 %v346
    %v631 = vunpack.c.l.b16 %v347
    %v632 = vunpack.c.l.b16 %v348
    %v633 = vunpack.c.l.b16 %v349
    %v634 = vunpack.c.l.b16 %v350
    %v635 = vunpack.c.l.b16 %v351
    %v636 = vunpack.c.l.b16 %v352
    %v637 = vunpack.c.l.b16 %v353
    %v638 = vunpack.c.l.b16 %v354
    %v639 = vunpack.c.l.b16 %v355
    %v640 = vunpack.c.l.b16 %v356
    %v641 = vunpack.c.l.b16 %v357
    %v642 = vunpack.c.l.b16 %v358
    %v643 = vunpack.c.l.b16 %v359
    %v644 = vunpack.c.l.b16 %v360
    %v645 = vunpack.c.l.b16 %v361
    %v646 = vunpack.c.l.b16 %v362
    %v647 = vunpack.c.l.b16 %v363
    %v648 = vunpack.c.l.b16 %v364
    %v649 = vunpack.c.l.b16 %v365
    %v650 = vunpack.c.l.b16 %v366
    %v651 = vunpack.c.l.b16 %v367
    %v652 = vunpack.c.l.b16 %v368
    %v653 = vunpack.c.l.b16 %v369
    %v654 = vunpack.c.l.b16 %v370
    %v655 = vunpack.c.l.b16 %v371
    %v656 = vunpack.c.l.b16 %v372
    %v657 = vunpack.c.l.b16 %v373
    %v658 = vunpack.c.l.b16 %v374
    %v659 = vunpack.c.l.b16 %v375
    %v660 = vunpack.c.l.b16 %v376
    %v661 = vunpack.c.l.b16 %v377
    %v662 = vunpack.c.l.b16 %v378
    %v663 = vunpack.c.l.b16 %v379
    %v664 = vunpack.c.l.b16 %v380
    %v665 = vunpack.c.l.b16 %v381
    %v666 = vunpack.c.l.b16 %v382
    %v667 = vunpack.c.l.b16 %v383
    %v668 = vunpack.c.l.b16 %v384
    %v669 = vunpack.c.l.b16 %v385
    %v670 = vunpack.c.l.b16 %v386
    %v671 = vunpack.c.l.b16 %v387
    %v672 = vunpack.c.l.b16 %v388
    %v673 = vunpack.c.l.b16 %v389
    %v674 = vunpack.c.l.b16 %v390
    %v675 = vunpack.c.l.b16 %v391
    %v676 = vunpack.c.l.b16 %v392
    %v677 = vunpack.c.l.b16 %v393
    %v678 = vunpack.c.l.b16 %v394
    %v679 = vunpack.c.l.b16 %v395
    %v680 = vunpack.c.l.b16 %v396
    %v681 = vunpack.c.l.b16 %v397
    %v682 = vunpack.c.l.b16 %v398
    %v683 = vunpack.c.l.b16 %v399
    %v684 = vunpack.c.l.b16 %v400
    %v685 = vunpack.c.l.b16 %v401
    %v686 = vunpack.c.l.b16 %v402
    %v687 = vunpack.c.l.b16 %v403
    %v688 = vunpack.c.l.b16 %v404
    %v689 = vunpack.c.l.b16 %v405
    %v690 = vunpack.c.l.b16 %v406
    %v691 = vunpack.c.l.b16 %v407
    %v692 = vunpack.c.l.b16 %v408
    %v693 = vunpack.c.l.b16 %v409
    %v694 = vunpack.c.l.b16 %v410
    %v695 = vunpack.c.l.b16 %v411
    %v696 = vunpack.c.l.b16 %v412
    %v697 = vunpack.c.l.b16 %v413
    %v698 = vunpack.c.l.b16 %v414
    %v699 = vunpack.c.l.b16 %v415
    %v700 = vunpack.c.l.b16 %v416
    %v701 = vunpack.c.l.b16 %v417
    %v702 = vunpack.c.l.b16 %v418
    %v703 = vunpack.c.l.b16 %v419
    %v704 = vunpack.c.l.b16 %v420
    %v705 = vunpack.c.l.b16 %v421
    %v706 = vunpack.c.l.b16 %v422
    %v707 = vunpack.c.l.b16 %v423
    %v708 = vunpack.c.l.b16 %v424
    %v709 = vunpack.c.l.b16 %v425
    %v710 = vunpack.c.l.b16 %v426
    %v711 = vunpack.c.l.b16 %v427
    %v712 = vunpack.c.l.b16 %v428
    %v713 = vunpack.c.l.b16 %v429
    %v714 = vunpack.c.l.b16 %v430
    %v715 = vunpack.c.l.b16 %v431
    %v716 = vunpack.c.l.b16 %v432
    %v717 = vunpack.c.l.b16 %v433
    %v718 = vunpack.c.l.b16 %v434
    %v719 = vunpack.c.l.b16 %v435
    %v720 = vunpack.c.l.b16 %v436
    %v721 = vunpack.c.l.b16 %v437
    %v722 = vunpack.c.l.b16 %v438
    %v723 = vunpack.c.l.b16 %v439
    %v724 = vunpack.c.l.b16 %v440
    %v725 = vunpack.c.l.b16 %v441
    %v726 = vunpack.c.l.b16 %v442
    %v727 = vunpack.c.l.b16 %v443
    %v728 = vunpack.c.l.b16 %v444
    %v729 = vunpack.c.l.b16 %v445
    %v730 = vunpack.c.l.b16 %v446
    %v731 = vunpack.c.l.b16 %v447
    %v732 = vunpack.c.l.b16 %v448
    %v733 = vunpack.c.l.b16 %v449
    %v734 = vunpack.c.l.b16 %v450
    %v735 = vunpack.c.l.b16 %v451
    %v736 = vunpack.c.l.b16 %v452
    %v737 = vunpack.c.l.b16 %v453
    %v738 = vunpack.c.l.b16 %v454
    %v739 = vpack.c.b16 %v612, %v611
    %v740 = vpack.c.b16 %v614, %v613
    %v741 = vpack.c.b16 %v616, %v615
    %v742 = vpack.c.b16 %v618, %v617
    %v743 = vpack.c.b16 %v620, %v619
    %v744 = vpack.c.b16 %v622, %v621
    %v745 = vpack.c.b16 %v624, %v623
    %v746 = vpack.c.b16 %v626, %v625
    %v747 = vpack.c.b16 %v628, %v627
    %v748 = vpack.c.b16 %v630, %v629
    %v749 = vpack.c.b16 %v632, %v631
    %v750 = vpack.c.b16 %v634, %v633
    %v751 = vpack.c.b16 %v636, %v635
    %v752 = vpack.c.b16 %v638, %v637
    %v753 = vpack.c.b16 %v640, %v639
    %v754 = vpack.c.b16 %v642, %v641
    %v755 = vpack.c.b16 %v644, %v643
    %v756 = vpack.c.b16 %v646, %v645
    %v757 = vpack.c.b16 %v648, %v647
    %v758 = vpack.c.b16 %v650, %v649
    %v759 = vpack.c.b16 %v652, %v651
    %v760 = vpack.c.b16 %v654, %v653
    %v761 = vpack.c.b16 %v656, %v655
    %v762 = vpack.c.b16 %v658, %v657
    %v763 = vpack.c.b16 %v660, %v659
    %v764 = vpack.c.b16 %v662, %v661
    %v765 = vpack.c.b16 %v664, %v663
    %v766 = vpack.c.b16 %v666, %v665
    %v767 = vpack.c.b16 %v668, %v667
    %v768 = vpack.c.b16 %v670, %v669
    %v769 = vpack.c.b16 %v672, %v671
    %v770 = vpack.c.b16 %v674, %v673
    %v771 = vpack.c.b16 %v676, %v675
    %v772 = vpack.c.b16 %v678, %v677
    %v773 = vpack.c.b16 %v680, %v679
    %v774 = vpack.c.b16 %v682, %v681
    %v775 = vpack.c.b16 %v684, %v683
    %v776 = vpack.c.b16 %v686, %v685
    %v777 = vpack.c.b16 %v688, %v687
    %v778 = vpack.c.b16 %v690, %v689
    %v779 = vpack.c.b16 %v692, %v691
    %v780 = vpack.c.b16 %v694, %v693
    %v781 = vpack.c.b16 %v696, %v695
    %v782 = vpack.c.b16 %v698, %v697
    %v783 = vpack.c.b16 %v700, %v699
    %v784 = vpack.c.b16 %v702, %v701
    %v785 = vpack.c.b16 %v704, %v703
    %v786 = vpack.c.b16 %v706, %v705
    %v787 = vpack.c.b16 %v708, %v707
    %v788 = vpack.c.b16 %v710, %v709
    %v789 = vpack.c.b16 %v712, %v711
    %v790 = vpack.c.b16 %v714, %v713
    %v791 = vpack.c.b16 %v716, %v715
    %v792 = vpack.c.b16 %v718, %v717
    %v793 = vpack.c.b16 %v720, %v719
    %v794 = vpack.c.b16 %v722, %v721
    %v795 = vpack.c.b16 %v724, %v723
    %v796 = vpack.c.b16 %v726, %v725
    %v797 = vpack.c.b16 %v728, %v727
    %v798 = vpack.c.b16 %v730, %v729
    %v799 = vpack.c.b16 %v732, %v731
    %v800 = vpack.c.b16 %v734, %v733
    %v801 = vpack.c.b16 %v736, %v735
    %v802 = vpack.c.b16 %v738, %v737
    %867 = vmatprep.subr.bf16.mxu0 0
    %868 = vmatpush1.bf16.msra.mxu0 %v746
    %869 = vmatprep.subr.bf16.mxu0 0
    %870 = vmatpush1.bf16.msra.mxu0 %v745
    %871 = vmatprep.subr.bf16.mxu0 0
    %872 = vmatpush1.bf16.msra.mxu0 %v744
    %873 = vmatprep.subr.bf16.mxu0 0
    %874 = vmatpush1.bf16.msra.mxu0 %v743
    %875 = vmatprep.subr.bf16.mxu0 0
    %876 = vmatpush1.bf16.msra.mxu0 %v742
    %877 = vmatprep.subr.bf16.mxu0 0
    %878 = vmatpush1.bf16.msra.mxu0 %v741
    %879 = vmatprep.subr.bf16.mxu0 0
    %880 = vmatpush1.bf16.msra.mxu0 %v740
    %881 = vmatprep.subr.bf16.mxu0 0
    %882 = vmatpush1.bf16.msra.mxu0 %v739
    %883 = vmatprep.subr.bf16.mxu0 0
    %884 = vmatpush2.bf16.msra.mxu0 %v754
    %885 = vmatprep.subr.bf16.mxu0 0
    %886 = vmatpush2.bf16.msra.mxu0 %v753
    %887 = vmatprep.subr.bf16.mxu0 0
    %888 = vmatpush2.bf16.msra.mxu0 %v752
    %889 = vmatprep.subr.bf16.mxu0 0
    %890 = vmatpush2.bf16.msra.mxu0 %v751
    %891 = vmatprep.subr.bf16.mxu0 0
    %892 = vmatpush2.bf16.msra.mxu0 %v750
    %893 = vmatprep.subr.bf16.mxu0 0
    %894 = vmatpush2.bf16.msra.mxu0 %v749
    %895 = vmatprep.subr.bf16.mxu0 0
    %896 = vmatpush2.bf16.msra.mxu0 %v748
    %897 = vmatprep.subr.bf16.mxu0 0
    %898 = vmatpush2.bf16.msra.mxu0 %v747
    %899 = vmatprep.mubr.bf16.mxu0 %v468
    %900 = vmatmul.mubr.bf16.gmra.mxu0 %v467
    %v901 = vpop.f32.mrf.mxu0
    %v902 = vadd.f32 0.0, %v901
    %v903 = vpop.f32.mrf.mxu0
    %v904 = vpop.f32.mrf.mxu0
    %v905 = vpop.f32.mrf.mxu0
    %906 = vdwg.mxu0
    %907 = vmatprep.subr.bf16.mxu0 0
    %908 = vmatpush1.bf16.msra.mxu0 %v762
    %909 = vmatprep.subr.bf16.mxu0 0
    %910 = vmatpush1.bf16.msra.mxu0 %v761
    %911 = vmatprep.subr.bf16.mxu0 0
    %912 = vmatpush1.bf16.msra.mxu0 %v760
    %913 = vmatprep.subr.bf16.mxu0 0
    %914 = vmatpush1.bf16.msra.mxu0 %v759
    %915 = vmatprep.subr.bf16.mxu0 0
    %916 = vmatpush1.bf16.msra.mxu0 %v758
    %917 = vmatprep.subr.bf16.mxu0 0
    %918 = vmatpush1.bf16.msra.mxu0 %v757
    %919 = vmatprep.subr.bf16.mxu0 0
    %920 = vmatpush1.bf16.msra.mxu0 %v756
    %921 = vmatprep.subr.bf16.mxu0 0
    %922 = vmatpush1.bf16.msra.mxu0 %v755
    %923 = vmatprep.subr.bf16.mxu0 0
    %924 = vmatpush2.bf16.msra.mxu0 %v770
    %925 = vmatprep.subr.bf16.mxu0 0
    %926 = vmatpush2.bf16.msra.mxu0 %v769
    %927 = vmatprep.subr.bf16.mxu0 0
    %928 = vmatpush2.bf16.msra.mxu0 %v768
    %929 = vmatprep.subr.bf16.mxu0 0
    %930 = vmatpush2.bf16.msra.mxu0 %v767
    %931 = vmatprep.subr.bf16.mxu0 0
    %932 = vmatpush2.bf16.msra.mxu0 %v766
    %933 = vmatprep.subr.bf16.mxu0 0
    %934 = vmatpush2.bf16.msra.mxu0 %v765
    %935 = vmatprep.subr.bf16.mxu0 0
    %936 = vmatpush2.bf16.msra.mxu0 %v764
    %937 = vmatprep.subr.bf16.mxu0 0
    %938 = vmatpush2.bf16.msra.mxu0 %v763
    %939 = vmatprep.mubr.bf16.mxu0 %v470
    %940 = vmatmul.mubr.bf16.gmra.mxu0 %v469
    %v941 = vpop.f32.mrf.mxu0
    %v942 = vadd.f32 %v902, %v941
    %v943 = vpop.f32.mrf.mxu0
    %v944 = vpop.f32.mrf.mxu0
    %v945 = vpop.f32.mrf.mxu0
    %946 = vdwg.mxu0
    %947 = vmatprep.subr.bf16.mxu0 0
    %948 = vmatpush1.bf16.msra.mxu0 %v778
    %949 = vmatprep.subr.bf16.mxu0 0
    %950 = vmatpush1.bf16.msra.mxu0 %v777
    %951 = vmatprep.subr.bf16.mxu0 0
    %952 = vmatpush1.bf16.msra.mxu0 %v776
    %953 = vmatprep.subr.bf16.mxu0 0
    %954 = vmatpush1.bf16.msra.mxu0 %v775
    %955 = vmatprep.subr.bf16.mxu0 0
    %956 = vmatpush1.bf16.msra.mxu0 %v774
    %957 = vmatprep.subr.bf16.mxu0 0
    %958 = vmatpush1.bf16.msra.mxu0 %v773
    %959 = vmatprep.subr.bf16.mxu0 0
    %960 = vmatpush1.bf16.msra.mxu0 %v772
    %961 = vmatprep.subr.bf16.mxu0 0
    %962 = vmatpush1.bf16.msra.mxu0 %v771
    %963 = vmatprep.subr.bf16.mxu0 0
    %964 = vmatpush2.bf16.msra.mxu0 %v786
    %965 = vmatprep.subr.bf16.mxu0 0
    %966 = vmatpush2.bf16.msra.mxu0 %v785
    %967 = vmatprep.subr.bf16.mxu0 0
    %968 = vmatpush2.bf16.msra.mxu0 %v784
    %969 = vmatprep.subr.bf16.mxu0 0
    %970 = vmatpush2.bf16.msra.mxu0 %v783
    %971 = vmatprep.subr.bf16.mxu0 0
    %972 = vmatpush2.bf16.msra.mxu0 %v782
    %973 = vmatprep.subr.bf16.mxu0 0
    %974 = vmatpush2.bf16.msra.mxu0 %v781
    %975 = vmatprep.subr.bf16.mxu0 0
    %976 = vmatpush2.bf16.msra.mxu0 %v780
    %977 = vmatprep.subr.bf16.mxu0 0
    %978 = vmatpush2.bf16.msra.mxu0 %v779
    %979 = vmatprep.mubr.bf16.mxu0 %v472
    %980 = vmatmul.mubr.bf16.gmra.mxu0 %v471
    %v981 = vpop.f32.mrf.mxu0
    %v982 = vadd.f32 %v942, %v981
    %v983 = vpop.f32.mrf.mxu0
    %v984 = vpop.f32.mrf.mxu0
    %v985 = vpop.f32.mrf.mxu0
    %986 = vdwg.mxu0
    %987 = vmatprep.subr.bf16.mxu0 0
    %988 = vmatpush1.bf16.msra.mxu0 %v794
    %989 = vmatprep.subr.bf16.mxu0 0
    %990 = vmatpush1.bf16.msra.mxu0 %v793
    %991 = vmatprep.subr.bf16.mxu0 0
    %992 = vmatpush1.bf16.msra.mxu0 %v792
    %993 = vmatprep.subr.bf16.mxu0 0
    %994 = vmatpush1.bf16.msra.mxu0 %v791
    %995 = vmatprep.subr.bf16.mxu0 0
    %996 = vmatpush1.bf16.msra.mxu0 %v790
    %997 = vmatprep.subr.bf16.mxu0 0
    %998 = vmatpush1.bf16.msra.mxu0 %v789
    %999 = vmatprep.subr.bf16.mxu0 0
    %1000 = vmatpush1.bf16.msra.mxu0 %v788
    %1001 = vmatprep.subr.bf16.mxu0 0
    %1002 = vmatpush1.bf16.msra.mxu0 %v787
    %1003 = vmatprep.subr.bf16.mxu0 0
    %1004 = vmatpush2.bf16.msra.mxu0 %v802
    %1005 = vmatprep.subr.bf16.mxu0 0
    %1006 = vmatpush2.bf16.msra.mxu0 %v801
    %1007 = vmatprep.subr.bf16.mxu0 0
    %1008 = vmatpush2.bf16.msra.mxu0 %v800
    %1009 = vmatprep.subr.bf16.mxu0 0
    %1010 = vmatpush2.bf16.msra.mxu0 %v799
    %1011 = vmatprep.subr.bf16.mxu0 0
    %1012 = vmatpush2.bf16.msra.mxu0 %v798
    %1013 = vmatprep.subr.bf16.mxu0 0
    %1014 = vmatpush2.bf16.msra.mxu0 %v797
    %1015 = vmatprep.subr.bf16.mxu0 0
    %1016 = vmatpush2.bf16.msra.mxu0 %v796
    %1017 = vmatprep.subr.bf16.mxu0 0
    %1018 = vmatpush2.bf16.msra.mxu0 %v795
    %1019 = vmatprep.mubr.bf16.mxu0 %v474
    %1020 = vmatmul.mubr.bf16.gmra.mxu0 %v473
    %v1021 = vpop.f32.mrf.mxu0
    %v1022 = vadd.f32 %v982, %v1021
    %v1023 = vpop.f32.mrf.mxu0
    %v1024 = vpop.f32.mrf.mxu0
    %v1025 = vpop.f32.mrf.mxu0
    %1026 = vdwg.mxu0
    %v1027 = vadd.f32 %v326, %v1022
    %1028 = vst [vmem:[#allocation10] sm:$0xff] %v1027
    // Predicated region
    $region46: #{tpu_custom_call.1} parent=1 // pred_check
      _
    $region47: #{tpu_custom_call.1} parent=1 // pred_check_branch
      %1030 = sbr.rel (0) target = $region49
    $region48: #{tpu_custom_call.1} parent=1 // pred_region
      %s1032 = ssub.s32 128, 128
      %1033 = vsyncadd [#allocation4], %s1032
      %s1035 = sshll.u32 [#allocation10], 4
      %s1036 = int_to_ptr.vmem [resolvable:$true] %s1035
      %1038 = dma.vmem_to_hbm [thread:$0]  %s1036, 128, %s6, [#allocation4]
    $region49: #{tpu_custom_call.1} parent=1 // pred_fallthru
      _
    // Predicated region
    $region50: #{tpu_custom_call.1} parent=1 // pred_check
      _
    $region51: #{tpu_custom_call.1} parent=1 // pred_check_branch
      %1040 = sbr.rel (0) target = $region53
    $region52: #{tpu_custom_call.1} parent=1 // pred_region
      %s1042 = ssub.s32 128, 128
      %1043 = vsyncadd [#allocation12], %s1042
      %s1045 = sshll.u32 [#allocation11], 4
      %s1046 = int_to_ptr.vmem [resolvable:$true] %s1045
      %1048 = dma.vmem_to_hbm [thread:$0]  %s1046, 128, %s7, [#allocation12]
    $region53: #{tpu_custom_call.1} parent=1 // pred_fallthru
      _
    // Predicated region
    $region54: #{tpu_custom_call.1} parent=1 // pred_check
      _
    $region55: #{tpu_custom_call.1} parent=1 // pred_check_branch
      %1050 = sbr.rel (0) target = $region57
    $region56: #{tpu_custom_call.1} parent=1 // pred_region
      %1051 = dma.done [#allocation4], 128
    $region57: #{tpu_custom_call.1} parent=1 // pred_fallthru
      _
    // Predicated region
    $region58: #{tpu_custom_call.1} parent=1 // pred_check
      _
    $region59: #{tpu_custom_call.1} parent=1 // pred_check_branch
      %1053 = sbr.rel (0) target = $region61
    $region60: #{tpu_custom_call.1} parent=1 // pred_region
      %1054 = dma.done [#allocation12], 128
    $region61: #{tpu_custom_call.1} parent=1 // pred_fallthru
      _
    %1055 = vsyncpa [#allocation3], 1
    %1056 = vsyncpa [#allocation6], 1
    %1057 = vsyncpa [#allocation9], 1
    %1058 = vsyncpa [#allocation4], 1
    %1059 = vsyncpa [#allocation12], 1

</llo_original>
